<compile_context>
chip_gen: v6e
topology: v6e:2x2x1
jax: 0.10.0
libtpu: 0.0.40
codegen_flags: <defaults>
</compile_context>

<pallas_src>
import jax
import jax.numpy as jnp
from jax.experimental import pallas as pl
from jax.experimental.pallas import tpu as pltpu


def _min_tv_kernel(x_ref, o_ref):
    # x_ref: (TB, H, W) block of planes.  o_ref: (1, 1) per-block partial sum.
    x = x_ref[...].astype(jnp.float32)

    # Shared squared neighbor differences.
    dv = x[:, 1:, :] - x[:, :-1, :]      # vertical:   x[i+1]-x[i]     (TB, H-1, W)
    dh = x[:, :, 1:] - x[:, :, :-1]      # horizontal: x[:,j+1]-x[:,j] (TB, H, W-1)
    dv2 = dv * dv
    dh2 = dh * dh

    # Interior pixels only — boundary pixels contribute exactly 0.
    top = dv2[:, :-1, 1:-1]              # (x[i,j]-x[i-1,j])^2
    bot = dv2[:, 1:,  1:-1]              # (x[i,j]-x[i+1,j])^2
    lft = dh2[:, 1:-1, :-1]              # (x[i,j]-x[i,j-1])^2
    rgt = dh2[:, 1:-1, 1:]               # (x[i,j]-x[i,j+1])^2

    min_tv = jnp.minimum(jnp.minimum(top, bot), jnp.minimum(lft, rgt))

    # Per-block partial sum (single reduce per grid step, stored (1,1)).
    o_ref[...] = jnp.zeros_like(o_ref) + jnp.sum(min_tv)


def minimal_tv_loss(x, *, max_planes_per_block=None):
    """x: (B, C, H, W) array. Returns scalar f32 min-TV loss (mean over all elems)."""
    B, C, H, W = x.shape
    n_elems = B * C * H * W

    if H < 3 or W < 3:
        # Every pixel sits on a boundary row/column -> min-TV is exactly 0.
        return jnp.float32(0.0)

    n_planes = B * C
    xf = x.reshape(n_planes, H, W)       # keep native dtype; kernel casts per-tile.

    # Planes per block: keep the f32 working tile around ~2 MiB so the input
    # double-buffer plus a handful of tile-sized temporaries fits comfortably
    # in scoped VMEM on every generation (including v7x's 64 MiB parts).
    plane_f32_bytes = H * W * 4
    tb = max(1, (2 * 1024 * 1024) // plane_f32_bytes)
    if max_planes_per_block is not None:
        tb = min(tb, max_planes_per_block)
    tb = min(tb, n_planes)

    n_blocks = pl.cdiv(n_planes, tb)
    n_pad = n_blocks * tb - n_planes
    if n_pad:
        # Zero planes have zero diffs everywhere -> contribute 0 to the sum;
        # the divisor stays the true B*C*H*W.
        xf = jnp.concatenate([xf, jnp.zeros((n_pad, H, W), xf.dtype)], axis=0)

    partial = pl.pallas_call(
        _min_tv_kernel,
        out_shape=jax.ShapeDtypeStruct((n_blocks, 1), jnp.float32),
        grid_spec=pltpu.PrefetchScalarGridSpec(
            num_scalar_prefetch=0,
            grid=(n_blocks,),
            in_specs=[pl.BlockSpec((tb, H, W), lambda i: (i, 0, 0))],
            out_specs=pl.BlockSpec((1, 1), lambda i: (i, 0)),
        ),
        compiler_params=pltpu.CompilerParams(
            dimension_semantics=("parallel",),
            vmem_limit_bytes=48 * 1024 * 1024,
        ),
    )(xf)

    # Tiny final reduction + mean in the wrapper (keeps the grid axis parallel).
    return jnp.sum(partial) * jnp.float32(1.0 / n_elems)


def _reference(x):
    # Pure-JAX reference mirroring the PyTorch module exactly.
    top = jnp.pad(x, ((0, 0), (0, 0), (1, 0), (0, 0)), mode="edge")[:, :, :-1, :]
    bottom = jnp.pad(x, ((0, 0), (0, 0), (0, 1), (0, 0)), mode="edge")[:, :, 1:, :]
    left = jnp.pad(x, ((0, 0), (0, 0), (0, 0), (1, 0)), mode="edge")[:, :, :, :-1]
    right = jnp.pad(x, ((0, 0), (0, 0), (0, 0), (0, 1)), mode="edge")[:, :, :, 1:]
    tv = jnp.minimum(jnp.minimum((x - top) ** 2, (x - bottom) ** 2),
                     jnp.minimum((x - left) ** 2, (x - right) ** 2))
    return tv.mean()


if __name__ == "__main__":
    key = jax.random.PRNGKey(0)
    x = jax.random.normal(key, (2, 4, 16, 16), dtype=jnp.float32)

    out = minimal_tv_loss(x)
    jax.block_until_ready(out)
    ref = _reference(x)
    assert jnp.allclose(out, ref, rtol=1e-5, atol=1e-6), (out, ref)

    # Also exercise the multi-block / padded-tail / parallel-grid path.
    out2 = minimal_tv_loss(x, max_planes_per_block=3)
    jax.block_until_ready(out2)
    assert jnp.allclose(out2, ref, rtol=1e-5, atol=1e-6), (out2, ref)

    print("KERNEL_OK")
</pallas_src>

<mosaic_0001>
module attributes {stable_mosaic.version = 11 : i64} {
  func.func @_min_tv_kernel(%arg0: i32, %arg1: memref<8x16x16xf32, #tpu.memory_space<vmem>>, %arg2: memref<1x1xf32, #tpu.memory_space<vmem>>) attributes {dimension_semantics = [#tpu.dimension_semantics<parallel>], iteration_bounds = array<i64: 1>, scalar_prefetch = 0 : i64, scratch_operands = 0 : i64, tpu.core_type = #tpu.core_type<tc>, window_params = [{transform_indices = @transform_0, window_bounds = array<i64: 8, 16, 16>}, {transform_indices = @transform_1, window_bounds = array<i64: 1, 1>}]} {
    %c0 = arith.constant 0 : index
    %c0_0 = arith.constant 0 : index
    %c0_1 = arith.constant 0 : index
    %0 = vector.load %arg1[%c0, %c0_0, %c0_1] : memref<8x16x16xf32, #tpu.memory_space<vmem>>, vector<8x16x16xf32>
    %1 = vector.extract_strided_slice %0 {offsets = [0, 1, 0], sizes = [8, 15, 16], strides = [1, 1, 1]} : vector<8x16x16xf32> to vector<8x15x16xf32>
    %2 = vector.extract_strided_slice %0 {offsets = [0, 0, 0], sizes = [8, 15, 16], strides = [1, 1, 1]} : vector<8x16x16xf32> to vector<8x15x16xf32>
    %3 = arith.subf %1, %2 : vector<8x15x16xf32>
    %4 = vector.extract_strided_slice %0 {offsets = [0, 0, 1], sizes = [8, 16, 15], strides = [1, 1, 1]} : vector<8x16x16xf32> to vector<8x16x15xf32>
    %5 = vector.extract_strided_slice %0 {offsets = [0, 0, 0], sizes = [8, 16, 15], strides = [1, 1, 1]} : vector<8x16x16xf32> to vector<8x16x15xf32>
    %6 = arith.subf %4, %5 : vector<8x16x15xf32>
    %7 = arith.mulf %3, %3 : vector<8x15x16xf32>
    %8 = arith.mulf %6, %6 : vector<8x16x15xf32>
    %9 = vector.extract_strided_slice %7 {offsets = [0, 0, 1], sizes = [8, 14, 14], strides = [1, 1, 1]} : vector<8x15x16xf32> to vector<8x14x14xf32>
    %10 = vector.extract_strided_slice %7 {offsets = [0, 1, 1], sizes = [8, 14, 14], strides = [1, 1, 1]} : vector<8x15x16xf32> to vector<8x14x14xf32>
    %11 = vector.extract_strided_slice %8 {offsets = [0, 1, 0], sizes = [8, 14, 14], strides = [1, 1, 1]} : vector<8x16x15xf32> to vector<8x14x14xf32>
    %12 = vector.extract_strided_slice %8 {offsets = [0, 1, 1], sizes = [8, 14, 14], strides = [1, 1, 1]} : vector<8x16x15xf32> to vector<8x14x14xf32>
    %13 = arith.minimumf %9, %10 : vector<8x14x14xf32>
    %14 = arith.minimumf %11, %12 : vector<8x14x14xf32>
    %15 = arith.minimumf %13, %14 : vector<8x14x14xf32>
    %cst = arith.constant 0.000000e+00 : f32
    %16 = vector.broadcast %cst : f32 to vector<1x1xf32>
    %17 = vector.shape_cast %15 : vector<8x14x14xf32> to vector<1x8x14x14xf32>
    %cst_2 = arith.constant dense<0.000000e+00> : vector<1xf32>
    %18 = vector.multi_reduction <add>, %17, %cst_2 [1, 2, 3] : vector<1x8x14x14xf32> to vector<1xf32>
    %19 = vector.shape_cast %18 : vector<1xf32> to vector<1x1x1x1xf32>
    %20 = vector.extract %19[0, 0, 0, 0] : f32 from vector<1x1x1x1xf32>
    %21 = vector.broadcast %20 : f32 to vector<1x1xf32>
    %22 = arith.addf %16, %21 : vector<1x1xf32>
    %c0_3 = arith.constant 0 : index
    %c0_4 = arith.constant 0 : index
    %23 = vector.load %arg2[%c0_3, %c0_4] : memref<1x1xf32, #tpu.memory_space<vmem>>, vector<1x1xf32>
    tpu.vector_store %arg2[%c0_3, %c0_4], %22 {strides = array<i32>} : memref<1x1xf32, #tpu.memory_space<vmem>>, vector<1x1xf32>,
    return
  }
  func.func @transform_0(%arg0: i32) -> (i32, i32, i32) {
    %c0_i32 = arith.constant 0 : i32
    %c0_i32_0 = arith.constant 0 : i32
    %c0_i32_1 = arith.constant 0 : i32
    return %arg0, %c0_i32, %c0_i32_0 : i32, i32, i32
  }
  func.func @transform_1(%arg0: i32) -> (i32, i32) {
    %c0_i32 = arith.constant 0 : i32
    %c0_i32_0 = arith.constant 0 : i32
    return %arg0, %c0_i32 : i32, i32
  }
}

</mosaic_0001>

<llo_original>
// kernel: tpu_custom_call.1
$region0: #{tpu_custom_call.1}
  #allocation0 [shape = 'u32[]', space=smem, size = 0x4, offset = 0x4, fixed_abs, tag = 'smem constant byte address 0x4 - core index']
  #allocation1 [shape = 'u32[144,128]{1,0:T(1,128)}', space=vmem, size = 0x12000, scoped, tag = 'internal scratch']
  %s0 = inlined_call_operand.hbm [shape: f32[8,16,16], index: 0, kind: input, shape index: {}]
  %s1 = inlined_call_operand.hbm [shape: f32[1,1], index: 1, kind: output, shape index: {}]
  %s2 = sld [smem:[#allocation0]]
  $region18: #{tpu_custom_call.1} parent=0
    _
  %s4 = ssub.s32 1, %s2
  %s5 = scalar_select 0, %s4, %s2
  $region1: #{tpu_custom_call.1} parent=0
    #allocation2 [shape = 'u8[65536]{0}', space=vmem, size = 0x10000, scoped, tag = 'input window, operand 0, single buffered']
    #allocation3 [shape = 's32[1]{0}', space=sflag, size = 0x4, scoped, tag = 'scoped memory for tpu_custom_call.1']
    #allocation4 [shape = 's32[1]{0}', space=sflag, size = 0x4, scoped, tag = 'scoped memory for tpu_custom_call.1']
    #allocation5 [shape = 'u8[512]{0}', space=vmem, size = 0x400, scoped, tag = 'output window, operand 0, single buffered']
    %6 = vsyncpa [#allocation3], 0
    %7 = vsyncpa [#allocation4], 0
    // Predicated region
    $region2: #{tpu_custom_call.1} parent=1 // pred_check
      _
    $region3: #{tpu_custom_call.1} parent=1 // pred_check_branch
      %9 = sbr.rel (0) target = $region5
    $region4: #{tpu_custom_call.1} parent=1 // pred_region
      %s11 = ssub.s32 2048, 2048
      %12 = vsyncadd [#allocation3], %s11
      %s13 = sshll.u32 [#allocation2], 4
      %s14 = int_to_ptr.vmem [resolvable:$true] %s13
      %19 = dma.hbm_to_vmem [thread:$0]  %s0, 2048, %s14, [#allocation3], 128, 128, 8
    $region5: #{tpu_custom_call.1} parent=1 // pred_fallthru
      _
    // Predicated region
    $region6: #{tpu_custom_call.1} parent=1 // pred_check
      _
    $region7: #{tpu_custom_call.1} parent=1 // pred_check_branch
      %21 = sbr.rel (0) target = $region9
    $region8: #{tpu_custom_call.1} parent=1 // pred_region
      %22 = dma.done [#allocation3], 2048
    $region9: #{tpu_custom_call.1} parent=1 // pred_fallthru
      _
    %v23 = vld [vmem:[#allocation2] sm:$0xff]
    %v24 = vld [vmem:[#allocation2 + $0x8] sm:$0xff]
    %v25 = vld [vmem:[#allocation2 + $0x10] sm:$0xff]
    %v26 = vld [vmem:[#allocation2 + $0x18] sm:$0xff]
    %v27 = vld [vmem:[#allocation2 + $0x20] sm:$0xff]
    %v28 = vld [vmem:[#allocation2 + $0x28] sm:$0xff]
    %v29 = vld [vmem:[#allocation2 + $0x30] sm:$0xff]
    %v30 = vld [vmem:[#allocation2 + $0x38] sm:$0xff]
    %v31 = vld [vmem:[#allocation2 + $0x40] sm:$0xff]
    %v32 = vld [vmem:[#allocation2 + $0x48] sm:$0xff]
    %v33 = vld [vmem:[#allocation2 + $0x50] sm:$0xff]
    %v34 = vld [vmem:[#allocation2 + $0x58] sm:$0xff]
    %v35 = vld [vmem:[#allocation2 + $0x60] sm:$0xff]
    %v36 = vld [vmem:[#allocation2 + $0x68] sm:$0xff]
    %v37 = vld [vmem:[#allocation2 + $0x70] sm:$0xff]
    %v38 = vld [vmem:[#allocation2 + $0x78] sm:$0xff]
    %vm55 = vcmask 1040384
    %v56 = vrot.slane %v23, 7
    %v57 = vrot.slane %v24, 7
    %v58 = vsel %vm55, %v56, %v57
    %v59 = vrot.slane %v25, 7
    %v60 = vrot.slane %v26, 7
    %v61 = vsel %vm55, %v59, %v60
    %v62 = vrot.slane %v27, 7
    %v63 = vrot.slane %v28, 7
    %v64 = vsel %vm55, %v62, %v63
    %v65 = vrot.slane %v29, 7
    %v66 = vrot.slane %v30, 7
    %v67 = vsel %vm55, %v65, %v66
    %v68 = vrot.slane %v31, 7
    %v69 = vrot.slane %v32, 7
    %v70 = vsel %vm55, %v68, %v69
    %v71 = vrot.slane %v33, 7
    %v72 = vrot.slane %v34, 7
    %v73 = vsel %vm55, %v71, %v72
    %v74 = vrot.slane %v35, 7
    %v75 = vrot.slane %v36, 7
    %v76 = vsel %vm55, %v74, %v75
    %v77 = vrot.slane %v37, 7
    %v78 = vrot.slane %v38, 7
    %v79 = vsel %vm55, %v77, %v78
    %v96 = vsub.f32 %v23, %v56
    %v97 = vsub.f32 %v24, %v58
    %v98 = vsub.f32 %v25, %v59
    %v99 = vsub.f32 %v26, %v61
    %v100 = vsub.f32 %v27, %v62
    %v101 = vsub.f32 %v28, %v64
    %v102 = vsub.f32 %v29, %v65
    %v103 = vsub.f32 %v30, %v67
    %v104 = vsub.f32 %v31, %v68
    %v105 = vsub.f32 %v32, %v70
    %v106 = vsub.f32 %v33, %v71
    %v107 = vsub.f32 %v34, %v73
    %v108 = vsub.f32 %v35, %v74
    %v109 = vsub.f32 %v36, %v76
    %v110 = vsub.f32 %v37, %v77
    %v111 = vsub.f32 %v38, %v79
    %112 = vrot.lane.b32.xlu0 %v23, 1
    %v113 = vpop.permute.xlu0 %112
    %114 = vrot.lane.b32.xlu0 %v24, 1
    %v115 = vpop.permute.xlu0 %114
    %116 = vrot.lane.b32.xlu0 %v25, 1
    %v117 = vpop.permute.xlu0 %116
    %118 = vrot.lane.b32.xlu0 %v26, 1
    %v119 = vpop.permute.xlu0 %118
    %120 = vrot.lane.b32.xlu0 %v27, 1
    %v121 = vpop.permute.xlu0 %120
    %122 = vrot.lane.b32.xlu0 %v28, 1
    %v123 = vpop.permute.xlu0 %122
    %124 = vrot.lane.b32.xlu0 %v29, 1
    %v125 = vpop.permute.xlu0 %124
    %126 = vrot.lane.b32.xlu0 %v30, 1
    %v127 = vpop.permute.xlu0 %126
    %128 = vrot.lane.b32.xlu0 %v31, 1
    %v129 = vpop.permute.xlu0 %128
    %130 = vrot.lane.b32.xlu0 %v32, 1
    %v131 = vpop.permute.xlu0 %130
    %132 = vrot.lane.b32.xlu0 %v33, 1
    %v133 = vpop.permute.xlu0 %132
    %134 = vrot.lane.b32.xlu0 %v34, 1
    %v135 = vpop.permute.xlu0 %134
    %136 = vrot.lane.b32.xlu0 %v35, 1
    %v137 = vpop.permute.xlu0 %136
    %138 = vrot.lane.b32.xlu0 %v36, 1
    %v139 = vpop.permute.xlu0 %138
    %140 = vrot.lane.b32.xlu0 %v37, 1
    %v141 = vpop.permute.xlu0 %140
    %142 = vrot.lane.b32.xlu0 %v38, 1
    %v143 = vpop.permute.xlu0 %142
    %v160 = vsub.f32 %v23, %v113
    %v161 = vsub.f32 %v24, %v115
    %v162 = vsub.f32 %v25, %v117
    %v163 = vsub.f32 %v26, %v119
    %v164 = vsub.f32 %v27, %v121
    %v165 = vsub.f32 %v28, %v123
    %v166 = vsub.f32 %v29, %v125
    %v167 = vsub.f32 %v30, %v127
    %v168 = vsub.f32 %v31, %v129
    %v169 = vsub.f32 %v32, %v131
    %v170 = vsub.f32 %v33, %v133
    %v171 = vsub.f32 %v34, %v135
    %v172 = vsub.f32 %v35, %v137
    %v173 = vsub.f32 %v36, %v139
    %v174 = vsub.f32 %v37, %v141
    %v175 = vsub.f32 %v38, %v143
    %v176 = vmul.f32 %v96, %v96
    %v177 = vmul.f32 %v97, %v97
    %v178 = vmul.f32 %v98, %v98
    %v179 = vmul.f32 %v99, %v99
    %v180 = vmul.f32 %v100, %v100
    %v181 = vmul.f32 %v101, %v101
    %v182 = vmul.f32 %v102, %v102
    %v183 = vmul.f32 %v103, %v103
    %v184 = vmul.f32 %v104, %v104
    %v185 = vmul.f32 %v105, %v105
    %v186 = vmul.f32 %v106, %v106
    %v187 = vmul.f32 %v107, %v107
    %v188 = vmul.f32 %v108, %v108
    %v189 = vmul.f32 %v109, %v109
    %v190 = vmul.f32 %v110, %v110
    %v191 = vmul.f32 %v111, %v111
    %v192 = vmul.f32 %v160, %v160
    %v193 = vmul.f32 %v161, %v161
    %v194 = vmul.f32 %v162, %v162
    %v195 = vmul.f32 %v163, %v163
    %v196 = vmul.f32 %v164, %v164
    %v197 = vmul.f32 %v165, %v165
    %v198 = vmul.f32 %v166, %v166
    %v199 = vmul.f32 %v167, %v167
    %v200 = vmul.f32 %v168, %v168
    %v201 = vmul.f32 %v169, %v169
    %v202 = vmul.f32 %v170, %v170
    %v203 = vmul.f32 %v171, %v171
    %v204 = vmul.f32 %v172, %v172
    %v205 = vmul.f32 %v173, %v173
    %v206 = vmul.f32 %v174, %v174
    %v207 = vmul.f32 %v175, %v175
    %vm224 = vcmask 1046528
    %v225 = vrot.slane %v176, 1
    %v226 = vrot.slane %v177, 1
    %v227 = vsel %vm224, %v225, %v226
    %v228 = vrot.slane %v178, 1
    %v229 = vrot.slane %v179, 1
    %v230 = vsel %vm224, %v228, %v229
    %v231 = vrot.slane %v180, 1
    %v232 = vrot.slane %v181, 1
    %v233 = vsel %vm224, %v231, %v232
    %v234 = vrot.slane %v182, 1
    %v235 = vrot.slane %v183, 1
    %v236 = vsel %vm224, %v234, %v235
    %v237 = vrot.slane %v184, 1
    %v238 = vrot.slane %v185, 1
    %v239 = vsel %vm224, %v237, %v238
    %v240 = vrot.slane %v186, 1
    %v241 = vrot.slane %v187, 1
    %v242 = vsel %vm224, %v240, %v241
    %v243 = vrot.slane %v188, 1
    %v244 = vrot.slane %v189, 1
    %v245 = vsel %vm224, %v243, %v244
    %v246 = vrot.slane %v190, 1
    %v247 = vrot.slane %v191, 1
    %v248 = vsel %vm224, %v246, %v247
    %v265 = vmin.f32 %v176, %v227
    %v266 = vmin.f32 %v177, %v226
    %v267 = vmin.f32 %v178, %v230
    %v268 = vmin.f32 %v179, %v229
    %v269 = vmin.f32 %v180, %v233
    %v270 = vmin.f32 %v181, %v232
    %v271 = vmin.f32 %v182, %v236
    %v272 = vmin.f32 %v183, %v235
    %v273 = vmin.f32 %v184, %v239
    %v274 = vmin.f32 %v185, %v238
    %v275 = vmin.f32 %v186, %v242
    %v276 = vmin.f32 %v187, %v241
    %v277 = vmin.f32 %v188, %v245
    %v278 = vmin.f32 %v189, %v244
    %v279 = vmin.f32 %v190, %v248
    %v280 = vmin.f32 %v191, %v247
    %297 = vrot.lane.b32.xlu0 %v192, 127
    %v298 = vpop.permute.xlu0 %297
    %299 = vrot.lane.b32.xlu0 %v193, 127
    %v300 = vpop.permute.xlu0 %299
    %301 = vrot.lane.b32.xlu0 %v194, 127
    %v302 = vpop.permute.xlu0 %301
    %303 = vrot.lane.b32.xlu0 %v195, 127
    %v304 = vpop.permute.xlu0 %303
    %305 = vrot.lane.b32.xlu0 %v196, 127
    %v306 = vpop.permute.xlu0 %305
    %307 = vrot.lane.b32.xlu0 %v197, 127
    %v308 = vpop.permute.xlu0 %307
    %309 = vrot.lane.b32.xlu0 %v198, 127
    %v310 = vpop.permute.xlu0 %309
    %311 = vrot.lane.b32.xlu0 %v199, 127
    %v312 = vpop.permute.xlu0 %311
    %313 = vrot.lane.b32.xlu0 %v200, 127
    %v314 = vpop.permute.xlu0 %313
    %315 = vrot.lane.b32.xlu0 %v201, 127
    %v316 = vpop.permute.xlu0 %315
    %317 = vrot.lane.b32.xlu0 %v202, 127
    %v318 = vpop.permute.xlu0 %317
    %319 = vrot.lane.b32.xlu0 %v203, 127
    %v320 = vpop.permute.xlu0 %319
    %321 = vrot.lane.b32.xlu0 %v204, 127
    %v322 = vpop.permute.xlu0 %321
    %323 = vrot.lane.b32.xlu0 %v205, 127
    %v324 = vpop.permute.xlu0 %323
    %325 = vrot.lane.b32.xlu0 %v206, 127
    %v326 = vpop.permute.xlu0 %325
    %327 = vrot.lane.b32.xlu0 %v207, 127
    %v328 = vpop.permute.xlu0 %327
    %v345 = vmin.f32 %v192, %v298
    %v346 = vmin.f32 %v193, %v300
    %v347 = vmin.f32 %v194, %v302
    %v348 = vmin.f32 %v195, %v304
    %v349 = vmin.f32 %v196, %v306
    %v350 = vmin.f32 %v197, %v308
    %v351 = vmin.f32 %v198, %v310
    %v352 = vmin.f32 %v199, %v312
    %v353 = vmin.f32 %v200, %v314
    %v354 = vmin.f32 %v201, %v316
    %v355 = vmin.f32 %v202, %v318
    %v356 = vmin.f32 %v203, %v320
    %v357 = vmin.f32 %v204, %v322
    %v358 = vmin.f32 %v205, %v324
    %v359 = vmin.f32 %v206, %v326
    %v360 = vmin.f32 %v207, %v328
    %v361 = vmin.f32 %v265, %v345
    %v362 = vmin.f32 %v266, %v346
    %v363 = vmin.f32 %v267, %v347
    %v364 = vmin.f32 %v268, %v348
    %v365 = vmin.f32 %v269, %v349
    %v366 = vmin.f32 %v270, %v350
    %v367 = vmin.f32 %v271, %v351
    %v368 = vmin.f32 %v272, %v352
    %v369 = vmin.f32 %v273, %v353
    %v370 = vmin.f32 %v274, %v354
    %v371 = vmin.f32 %v275, %v355
    %v372 = vmin.f32 %v276, %v356
    %v373 = vmin.f32 %v277, %v357
    %v374 = vmin.f32 %v278, %v358
    %v375 = vmin.f32 %v279, %v359
    %v376 = vmin.f32 %v280, %v360
    %v393 = vrot.slane %v361, 1
    %v394 = vrot.slane %v362, 1
    %v395 = vsel %vm224, %v393, %v394
    %v396 = vrot.slane %v363, 1
    %v397 = vrot.slane %v364, 1
    %v398 = vsel %vm224, %v396, %v397
    %v399 = vrot.slane %v365, 1
    %v400 = vrot.slane %v366, 1
    %v401 = vsel %vm224, %v399, %v400
    %v402 = vrot.slane %v367, 1
    %v403 = vrot.slane %v368, 1
    %v404 = vsel %vm224, %v402, %v403
    %v405 = vrot.slane %v369, 1
    %v406 = vrot.slane %v370, 1
    %v407 = vsel %vm224, %v405, %v406
    %v408 = vrot.slane %v371, 1
    %v409 = vrot.slane %v372, 1
    %v410 = vsel %vm224, %v408, %v409
    %v411 = vrot.slane %v373, 1
    %v412 = vrot.slane %v374, 1
    %v413 = vsel %vm224, %v411, %v412
    %v414 = vrot.slane %v375, 1
    %v415 = vrot.slane %v376, 1
    %v416 = vsel %vm224, %v414, %v415
    %417 = vrot.lane.b32.xlu0 %v395, 127
    %v418 = vpop.permute.xlu0 %417
    %419 = vrot.lane.b32.xlu0 %v394, 127
    %v420 = vpop.permute.xlu0 %419
    %421 = vrot.lane.b32.xlu0 %v398, 127
    %v422 = vpop.permute.xlu0 %421
    %423 = vrot.lane.b32.xlu0 %v397, 127
    %v424 = vpop.permute.xlu0 %423
    %425 = vrot.lane.b32.xlu0 %v401, 127
    %v426 = vpop.permute.xlu0 %425
    %427 = vrot.lane.b32.xlu0 %v400, 127
    %v428 = vpop.permute.xlu0 %427
    %429 = vrot.lane.b32.xlu0 %v404, 127
    %v430 = vpop.permute.xlu0 %429
    %431 = vrot.lane.b32.xlu0 %v403, 127
    %v432 = vpop.permute.xlu0 %431
    %433 = vrot.lane.b32.xlu0 %v407, 127
    %v434 = vpop.permute.xlu0 %433
    %435 = vrot.lane.b32.xlu0 %v406, 127
    %v436 = vpop.permute.xlu0 %435
    %437 = vrot.lane.b32.xlu0 %v410, 127
    %v438 = vpop.permute.xlu0 %437
    %439 = vrot.lane.b32.xlu0 %v409, 127
    %v440 = vpop.permute.xlu0 %439
    %441 = vrot.lane.b32.xlu0 %v413, 127
    %v442 = vpop.permute.xlu0 %441
    %443 = vrot.lane.b32.xlu0 %v412, 127
    %v444 = vpop.permute.xlu0 %443
    %445 = vrot.lane.b32.xlu0 %v416, 127
    %v446 = vpop.permute.xlu0 %445
    %447 = vrot.lane.b32.xlu0 %v415, 127
    %v448 = vpop.permute.xlu0 %447
    %vm465 = vcmask 113664
    %v466 = vsel %vm465, %v418, 0.0
    %vm467 = vcmask 111616
    %v468 = vsel %vm467, %v420, 0.0
    %v469 = vadd.f32 %v466, %v468
    %v470 = vsel %vm465, %v422, 0.0
    %v471 = vadd.f32 %v469, %v470
    %v472 = vsel %vm467, %v424, 0.0
    %v473 = vadd.f32 %v471, %v472
    %v474 = vsel %vm465, %v426, 0.0
    %v475 = vadd.f32 %v473, %v474
    %v476 = vsel %vm467, %v428, 0.0
    %v477 = vadd.f32 %v475, %v476
    %v478 = vsel %vm465, %v430, 0.0
    %v479 = vadd.f32 %v477, %v478
    %v480 = vsel %vm467, %v432, 0.0
    %v481 = vadd.f32 %v479, %v480
    %v482 = vsel %vm465, %v434, 0.0
    %v483 = vadd.f32 %v481, %v482
    %v484 = vsel %vm467, %v436, 0.0
    %v485 = vadd.f32 %v483, %v484
    %v486 = vsel %vm465, %v438, 0.0
    %v487 = vadd.f32 %v485, %v486
    %v488 = vsel %vm467, %v440, 0.0
    %v489 = vadd.f32 %v487, %v488
    %v490 = vsel %vm465, %v442, 0.0
    %v491 = vadd.f32 %v489, %v490
    %v492 = vsel %vm467, %v444, 0.0
    %v493 = vadd.f32 %v491, %v492
    %v494 = vsel %vm465, %v446, 0.0
    %v495 = vadd.f32 %v493, %v494
    %v496 = vsel %vm467, %v448, 0.0
    %v497 = vadd.f32 %v495, %v496
    %498 = vadd.xlane.f32.xlu0 %v497
    %v499 = vpop.xlane.xlu0 %498
    %v500 = vrot.slane %v499, 4
    %v501 = vadd.f32 %v499, %v500
    %v502 = vrot.slane %v501, 2
    %v503 = vadd.f32 %v501, %v502
    %v504 = vrot.slane %v503, 1
    %v505 = vadd.f32 %v503, %v504
    %s506 = vtos %v505
    %v507 = vstv %s506
    %v508 = vadd.f32 %v507, 0.0
    %vm509 = vcmask 0
    %510 = vst.msk [vmem:[#allocation5] sm:$0x1] %vm509, %v508
    // Predicated region
    $region10: #{tpu_custom_call.1} parent=1 // pred_check
      _
    $region11: #{tpu_custom_call.1} parent=1 // pred_check_branch
      %512 = sbr.rel (0) target = $region13
    $region12: #{tpu_custom_call.1} parent=1 // pred_region
      %s514 = ssub.s32 16, 16
      %515 = vsyncadd [#allocation4], %s514
      %s517 = sshll.u32 [#allocation5], 4
      %s518 = int_to_ptr.vmem [resolvable:$true] %s517
      %520 = dma.vmem_to_hbm [thread:$0]  %s518, 16, %s1, [#allocation4]
    $region13: #{tpu_custom_call.1} parent=1 // pred_fallthru
      _
    // Predicated region
    $region14: #{tpu_custom_call.1} parent=1 // pred_check
      _
    $region15: #{tpu_custom_call.1} parent=1 // pred_check_branch
      %522 = sbr.rel (0) target = $region17
    $region16: #{tpu_custom_call.1} parent=1 // pred_region
      %523 = dma.done [#allocation4], 16
    $region17: #{tpu_custom_call.1} parent=1 // pred_fallthru
      _
    %524 = vsyncpa [#allocation3], 1
    %525 = vsyncpa [#allocation4], 1

</llo_original>
